<compile_context>
chip_gen: v7x
topology: tpu7x:2x2x1
jax: 0.10.0
libtpu: 0.0.40
codegen_flags: <defaults>
</compile_context>

<pallas_src>
import jax
import jax.numpy as jnp
from jax.experimental import pallas as pl
from jax.experimental.pallas import tpu as pltpu

TILE_N = 512  # node-row tile (multiple of 8 sublanes)


def _round_up(x, m):
    return ((x + m - 1) // m) * m


def _make_wcss_kernel(n_rows, tile_n, tiles_per_split, needs_mask):
    def kernel(s_ref, x_ref, m_out, colsum_out, t_out):
        split = pl.program_id(0)
        t = pl.program_id(1)

        @pl.when(t == 0)
        def _():
            m_out[...] = jnp.zeros_like(m_out)
            colsum_out[...] = jnp.zeros_like(colsum_out)
            t_out[...] = jnp.zeros_like(t_out)

        S = s_ref[...].astype(jnp.float32)   # (tile_n, k)
        X = x_ref[...].astype(jnp.float32)   # (tile_n, d)

        if needs_mask:
            # Zero rows past N (tail tile of the last split, or duplicated tiles
            # DMA'd when a split's tile range runs past n_tiles).  Both S and X
            # are zeroed so garbage past N cannot leak NaN/Inf into t.
            g = split * tiles_per_split + t
            remaining = n_rows - g * tile_n
            row_idx = jax.lax.broadcasted_iota(jnp.int32, (tile_n, 1), 0)
            valid = row_idx < remaining
            S = jnp.where(valid, S, 0.0)
            X = jnp.where(valid, X, 0.0)

        # M += S^T X, contracting the row axis directly (no materialized transpose).
        m_out[...] += jax.lax.dot_general(
            S, X,
            dimension_numbers=(((0,), (0,)), ((), ())),
            preferred_element_type=jnp.float32,
        )[None]
        # Column sums of S, kept lane-dense as (1, k).
        colsum_out[...] += jnp.sum(S, axis=0, keepdims=True)[None]
        # sum_n (sum_j S[n,j]) * ||X[n]||^2 on the VPU (no degenerate MXU matmul).
        row_w = jnp.sum(S, axis=1, keepdims=True)      # (tile_n, 1)
        xsq = jnp.sum(X * X, axis=1, keepdims=True)    # (tile_n, 1)
        t_out[...] += jnp.sum(row_w * xsq)

    return kernel


def wcss_pallas(S, X, tile_n=TILE_N):
    """Soft within-cluster sum of squares via Pallas; returns a scalar (f32)."""
    N, k = S.shape
    Nx, d = X.shape
    assert N == Nx, (S.shape, X.shape)

    tile_n = min(tile_n, _round_up(N, 8))
    n_tiles = pl.cdiv(N, tile_n)
    # Leading "parallel" axis: lets v7x's two TensorCores each reduce half of the
    # row tiles.  Harmless (sequential iteration) on 1-TC chips (v5e/v6e).
    n_splits = 2 if n_tiles >= 2 else 1
    tiles_per_split = pl.cdiv(n_tiles, n_splits)
    needs_mask = (N % tile_n != 0) or (n_splits * tiles_per_split != n_tiles)

    def row_block(split, t):
        # Clamp so DMAs always stay in bounds; over-run tiles are masked in-kernel.
        g = jnp.minimum(split * tiles_per_split + t, n_tiles - 1)
        return (g, 0)

    # Inputs stay in their native dtype (bf16 stays bf16 -> half the HBM traffic);
    # all accumulation is f32 inside the kernel.
    s_bytes = 2 * tile_n * k * S.dtype.itemsize          # double-buffered S tile
    x_bytes = 2 * tile_n * d * X.dtype.itemsize          # double-buffered X tile
    out_bytes = 2 * 4 * (k * d + k + 1)                  # resident f32 accumulators
    vmem_limit = int(min(s_bytes + x_bytes + out_bytes + (16 << 20), 48 << 20))

    kernel = _make_wcss_kernel(N, tile_n, tiles_per_split, needs_mask)

    m_parts, col_parts, t_parts = pl.pallas_call(
        kernel,
        out_shape=(
            jax.ShapeDtypeStruct((n_splits, k, d), jnp.float32),
            jax.ShapeDtypeStruct((n_splits, 1, k), jnp.float32),
            jax.ShapeDtypeStruct((n_splits, 1, 1), jnp.float32),
        ),
        grid_spec=pltpu.PrefetchScalarGridSpec(
            num_scalar_prefetch=0,
            grid=(n_splits, tiles_per_split),
            in_specs=[
                pl.BlockSpec((tile_n, k), row_block),
                pl.BlockSpec((tile_n, d), row_block),
            ],
            out_specs=(
                pl.BlockSpec((1, k, d), lambda s, t: (s, 0, 0)),
                pl.BlockSpec((1, 1, k), lambda s, t: (s, 0, 0)),
                pl.BlockSpec((1, 1, 1), lambda s, t: (s, 0, 0)),
            ),
        ),
        compiler_params=pltpu.CompilerParams(
            dimension_semantics=("parallel", "arbitrary"),
            vmem_limit_bytes=vmem_limit,
        ),
    )(S, X)

    # Tiny final combine in plain JAX.
    M = m_parts.sum(axis=0)              # (k, d)  = S^T X
    col = col_parts.sum(axis=0)[0]       # (k,)    = S^T 1
    t_tot = t_parts.sum()                # scalar  = sum_n (sum_j S_nj) ||x_n||^2
    denom = jnp.maximum(col, 1e-12)
    between = jnp.sum((M * M) / denom[:, None])
    return t_tot - between


def cluster_loss(Lamb, Attributes, Probabilities, method):
    """JAX/Pallas port of ClusterLoss.forward. Returns (loss, loss_list).

    loss_list holds weighted per-level WCSS values as JAX scalars (no per-level
    host sync; convert with float() outside if Python floats are needed).
    """
    loss = jnp.zeros((), jnp.float32)
    loss_list = []
    S_cum = None  # bottom-up: eye(N) @ P0 @ ... == P0 @ ..., so skip the eye(N)
    for idx, P in enumerate(Probabilities):
        Attr = Attributes[idx] if isinstance(Attributes, list) else Attributes
        if method == "bottom_up":
            P32 = P.astype(jnp.float32)
            S_cum = P32 if S_cum is None else S_cum @ P32
            S_eff = S_cum
        else:  # 'top_down'
            S_eff = P
        within_ss = wcss_pallas(S_eff, Attr)
        weight = Lamb[idx] if isinstance(Lamb, (list, tuple)) else Lamb
        loss_list.append(weight * within_ss)
        loss = loss + weight * within_ss
    return loss, loss_list


# ----- pure-JAX reference (for verification) -----
def _wcss_ref(S, X):
    S = S.astype(jnp.float32)
    X = X.astype(jnp.float32)
    s = jnp.maximum(S.sum(0), 1e-12)           # (k,)
    C = (S.T @ X) / s[:, None]                 # (k, d)
    diff = X[:, None, :] - C[None, :, :]       # (N, k, d)
    return jnp.sum(S * jnp.sum(diff * diff, -1))


def _cluster_loss_ref(Lamb, X, Probabilities, method):
    loss = 0.0
    if method == "bottom_up":
        S_cum = jnp.eye(X.shape[0], dtype=jnp.float32)
    for idx, P in enumerate(Probabilities):
        if method == "bottom_up":
            S_cum = S_cum @ P
            S_eff = S_cum
        else:
            S_eff = P
        loss = loss + Lamb[idx] * _wcss_ref(S_eff, X)
    return loss


if __name__ == "__main__":
    key = jax.random.PRNGKey(0)
    N, d = 128, 32
    ks = [8, 4, 2]          # cluster counts per hierarchical level (l = 3)
    Lamb = [0.5, 0.3, 0.2]

    keys = jax.random.split(key, 2 + 2 * len(ks))
    X = jax.random.normal(keys[0], (N, d), jnp.float32)

    # bottom-up: P0 (N,k0), P1 (k0,k1), P2 (k1,k2) — row-stochastic via softmax
    bu_probs = []
    prev = N
    for i, k in enumerate(ks):
        logits = jax.random.normal(keys[1 + i], (prev, k), jnp.float32)
        bu_probs.append(jax.nn.softmax(logits, axis=-1))
        prev = k

    # top-down: each P is (N, k) independently
    td_probs = []
    for i, k in enumerate(ks):
        logits = jax.random.normal(keys[1 + len(ks) + i], (N, k), jnp.float32)
        td_probs.append(jax.nn.softmax(logits, axis=-1))

    loss_bu, loss_list_bu = cluster_loss(Lamb, X, bu_probs, method="bottom_up")
    loss_td, loss_list_td = cluster_loss(Lamb, X, td_probs, method="top_down")
    jax.block_until_ready((loss_bu, loss_td))

    ref_bu = _cluster_loss_ref(Lamb, X, bu_probs, "bottom_up")
    ref_td = _cluster_loss_ref(Lamb, X, td_probs, "top_down")
    assert jnp.allclose(loss_bu, ref_bu, rtol=1e-4, atol=1e-3), (loss_bu, ref_bu)
    assert jnp.allclose(loss_td, ref_td, rtol=1e-4, atol=1e-3), (loss_td, ref_td)

    # cluster_loss is now jit-able (no host syncs inside the level loop)
    jit_td = jax.jit(
        lambda x, probs: cluster_loss(Lamb, x, list(probs), "top_down")[0]
    )(X, tuple(td_probs))
    jax.block_until_ready(jit_td)
    assert jnp.allclose(jit_td, ref_td, rtol=1e-4, atol=1e-3), (jit_td, ref_td)

    # Multi-tile / tail-mask / dual-split path: N not a multiple of TILE_N.
    N2, k2 = 1000, 8
    k_extra = jax.random.split(keys[-1], 2)
    X2 = jax.random.normal(k_extra[0], (N2, d), jnp.float32)
    S2 = jax.nn.softmax(jax.random.normal(k_extra[1], (N2, k2), jnp.float32), axis=-1)
    w2 = wcss_pallas(S2, X2)
    jax.block_until_ready(w2)
    ref2 = _wcss_ref(S2, X2)
    assert jnp.allclose(w2, ref2, rtol=1e-3, atol=1e-1), (w2, ref2)

    print("KERNEL_OK")
</pallas_src>

<mosaic_0001>
module attributes {stable_mosaic.version = 11 : i64} {
  func.func @kernel(%arg0: i32, %arg1: i32, %arg2: memref<128x8xf32, #tpu.memory_space<vmem>>, %arg3: memref<128x32xf32, #tpu.memory_space<vmem>>, %arg4: memref<1x8x32xf32, #tpu.memory_space<vmem>>, %arg5: memref<1x1x8xf32, #tpu.memory_space<vmem>>, %arg6: memref<1x1x1xf32, #tpu.memory_space<vmem>>) attributes {dimension_semantics = [#tpu.dimension_semantics<parallel>, #tpu.dimension_semantics<arbitrary>], iteration_bounds = array<i64: 1, 1>, scalar_prefetch = 0 : i64, scratch_operands = 0 : i64, tpu.core_type = #tpu.core_type<tc>, window_params = [{transform_indices = @transform_0, window_bounds = array<i64: 128, 8>}, {transform_indices = @transform_1, window_bounds = array<i64: 128, 32>}, {transform_indices = @transform_2, window_bounds = array<i64: 1, 8, 32>}, {transform_indices = @transform_3, window_bounds = array<i64: 1, 1, 8>}, {transform_indices = @transform_4, window_bounds = array<i64: 1, 1, 1>}]} {
    %c0_i32 = arith.constant 0 : i32
    %0 = arith.cmpi eq, %arg1, %c0_i32 : i32
    %1 = arith.extui %0 : i1 to i32
    %c0_i32_0 = arith.constant 0 : i32
    %2 = arith.cmpi ne, %1, %c0_i32_0 : i32
    scf.if %2 {
      %cst_26 = arith.constant 0.000000e+00 : f32
      %30 = vector.broadcast %cst_26 : f32 to vector<1x8x32xf32>
      %c0_27 = arith.constant 0 : index
      %c0_28 = arith.constant 0 : index
      %c0_29 = arith.constant 0 : index
      %31 = vector.load %arg4[%c0_27, %c0_28, %c0_29] : memref<1x8x32xf32, #tpu.memory_space<vmem>>, vector<1x8x32xf32>
      tpu.vector_store %arg4[%c0_27, %c0_28, %c0_29], %30 {strides = array<i32>} : memref<1x8x32xf32, #tpu.memory_space<vmem>>, vector<1x8x32xf32>,
      %cst_30 = arith.constant 0.000000e+00 : f32
      %32 = vector.broadcast %cst_30 : f32 to vector<1x1x8xf32>
      %c0_31 = arith.constant 0 : index
      %c0_32 = arith.constant 0 : index
      %c0_33 = arith.constant 0 : index
      %33 = vector.load %arg5[%c0_31, %c0_32, %c0_33] : memref<1x1x8xf32, #tpu.memory_space<vmem>>, vector<1x1x8xf32>
      tpu.vector_store %arg5[%c0_31, %c0_32, %c0_33], %32 {strides = array<i32>} : memref<1x1x8xf32, #tpu.memory_space<vmem>>, vector<1x1x8xf32>,
      %cst_34 = arith.constant 0.000000e+00 : f32
      %34 = vector.broadcast %cst_34 : f32 to vector<1x1x1xf32>
      %c0_35 = arith.constant 0 : index
      %c0_36 = arith.constant 0 : index
      %c0_37 = arith.constant 0 : index
      %35 = vector.load %arg6[%c0_35, %c0_36, %c0_37] : memref<1x1x1xf32, #tpu.memory_space<vmem>>, vector<1x1x1xf32>
      tpu.vector_store %arg6[%c0_35, %c0_36, %c0_37], %34 {strides = array<i32>} : memref<1x1x1xf32, #tpu.memory_space<vmem>>, vector<1x1x1xf32>,
    } else {
    }
    %c0 = arith.constant 0 : index
    %c0_1 = arith.constant 0 : index
    %3 = vector.load %arg2[%c0, %c0_1] : memref<128x8xf32, #tpu.memory_space<vmem>>, vector<128x8xf32>
    %c0_2 = arith.constant 0 : index
    %c0_3 = arith.constant 0 : index
    %4 = vector.load %arg3[%c0_2, %c0_3] : memref<128x32xf32, #tpu.memory_space<vmem>>, vector<128x32xf32>
    %c0_4 = arith.constant 0 : index
    %c0_5 = arith.constant 0 : index
    %c0_6 = arith.constant 0 : index
    %5 = vector.load %arg4[%c0_4, %c0_5, %c0_6] : memref<1x8x32xf32, #tpu.memory_space<vmem>>, vector<1x8x32xf32>
    %cst = arith.constant dense<0.000000e+00> : vector<8x32xf32>
    %6 = tpu.matmul %3, %4, %cst {dimension_numbers = #tpu.dot_dimension_numbers<[0], [0], [1], [1], [0, 1, 1, 1], [], []>} : vector<128x8xf32>, vector<128x32xf32>, vector<8x32xf32> -> vector<8x32xf32>
    %7 = vector.shape_cast %6 : vector<8x32xf32> to vector<1x8x32xf32>
    %8 = arith.addf %5, %7 : vector<1x8x32xf32>
    %c0_7 = arith.constant 0 : index
    %c0_8 = arith.constant 0 : index
    %c0_9 = arith.constant 0 : index
    %9 = vector.load %arg4[%c0_7, %c0_8, %c0_9] : memref<1x8x32xf32, #tpu.memory_space<vmem>>, vector<1x8x32xf32>
    tpu.vector_store %arg4[%c0_7, %c0_8, %c0_9], %8 {strides = array<i32>} : memref<1x8x32xf32, #tpu.memory_space<vmem>>, vector<1x8x32xf32>,
    %c0_10 = arith.constant 0 : index
    %c0_11 = arith.constant 0 : index
    %c0_12 = arith.constant 0 : index
    %10 = vector.load %arg5[%c0_10, %c0_11, %c0_12] : memref<1x1x8xf32, #tpu.memory_space<vmem>>, vector<1x1x8xf32>
    %cst_13 = arith.constant dense<0.000000e+00> : vector<8xf32>
    %11 = vector.multi_reduction <add>, %3, %cst_13 [0] : vector<128x8xf32> to vector<8xf32>
    %12 = vector.shape_cast %11 : vector<8xf32> to vector<1x8xf32>
    %13 = vector.shape_cast %12 : vector<1x8xf32> to vector<1x1x8xf32>
    %14 = arith.addf %10, %13 : vector<1x1x8xf32>
    %c0_14 = arith.constant 0 : index
    %c0_15 = arith.constant 0 : index
    %c0_16 = arith.constant 0 : index
    %15 = vector.load %arg5[%c0_14, %c0_15, %c0_16] : memref<1x1x8xf32, #tpu.memory_space<vmem>>, vector<1x1x8xf32>
    tpu.vector_store %arg5[%c0_14, %c0_15, %c0_16], %14 {strides = array<i32>} : memref<1x1x8xf32, #tpu.memory_space<vmem>>, vector<1x1x8xf32>,
    %cst_17 = arith.constant dense<0.000000e+00> : vector<128xf32>
    %16 = vector.multi_reduction <add>, %3, %cst_17 [1] : vector<128x8xf32> to vector<128xf32>
    %17 = vector.shape_cast %16 : vector<128xf32> to vector<128x1xf32>
    %18 = arith.mulf %4, %4 : vector<128x32xf32>
    %cst_18 = arith.constant dense<0.000000e+00> : vector<128xf32>
    %19 = vector.multi_reduction <add>, %18, %cst_18 [1] : vector<128x32xf32> to vector<128xf32>
    %20 = vector.shape_cast %19 : vector<128xf32> to vector<128x1xf32>
    %c0_19 = arith.constant 0 : index
    %c0_20 = arith.constant 0 : index
    %c0_21 = arith.constant 0 : index
    %21 = vector.load %arg6[%c0_19, %c0_20, %c0_21] : memref<1x1x1xf32, #tpu.memory_space<vmem>>, vector<1x1x1xf32>
    %22 = arith.mulf %17, %20 : vector<128x1xf32>
    %23 = vector.shape_cast %22 : vector<128x1xf32> to vector<1x128x1xf32>
    %cst_22 = arith.constant dense<0.000000e+00> : vector<1xf32>
    %24 = vector.multi_reduction <add>, %23, %cst_22 [1, 2] : vector<1x128x1xf32> to vector<1xf32>
    %25 = vector.shape_cast %24 : vector<1xf32> to vector<1x1x1xf32>
    %26 = vector.extract %25[0, 0, 0] : f32 from vector<1x1x1xf32>
    %27 = vector.broadcast %26 : f32 to vector<1x1x1xf32>
    %28 = arith.addf %21, %27 : vector<1x1x1xf32>
    %c0_23 = arith.constant 0 : index
    %c0_24 = arith.constant 0 : index
    %c0_25 = arith.constant 0 : index
    %29 = vector.load %arg6[%c0_23, %c0_24, %c0_25] : memref<1x1x1xf32, #tpu.memory_space<vmem>>, vector<1x1x1xf32>
    tpu.vector_store %arg6[%c0_23, %c0_24, %c0_25], %28 {strides = array<i32>} : memref<1x1x1xf32, #tpu.memory_space<vmem>>, vector<1x1x1xf32>,
    return
  }
  func.func @transform_0(%arg0: i32, %arg1: i32) -> (i32, i32) {
    %c1_i32 = arith.constant 1 : i32
    %0 = arith.muli %arg0, %c1_i32 : i32
    %1 = arith.addi %0, %arg1 : i32
    %c0_i32 = arith.constant 0 : i32
    %2 = arith.minsi %1, %c0_i32 : i32
    %c0_i32_0 = arith.constant 0 : i32
    %c0_i32_1 = arith.constant 0 : i32
    return %2, %c0_i32_0 : i32, i32
  }
  func.func @transform_1(%arg0: i32, %arg1: i32) -> (i32, i32) {
    %c1_i32 = arith.constant 1 : i32
    %0 = arith.muli %arg0, %c1_i32 : i32
    %1 = arith.addi %0, %arg1 : i32
    %c0_i32 = arith.constant 0 : i32
    %2 = arith.minsi %1, %c0_i32 : i32
    %c0_i32_0 = arith.constant 0 : i32
    %c0_i32_1 = arith.constant 0 : i32
    return %2, %c0_i32_0 : i32, i32
  }
  func.func @transform_2(%arg0: i32, %arg1: i32) -> (i32, i32, i32) {
    %c0_i32 = arith.constant 0 : i32
    %c0_i32_0 = arith.constant 0 : i32
    %c0_i32_1 = arith.constant 0 : i32
    return %arg0, %c0_i32, %c0_i32_0 : i32, i32, i32
  }
  func.func @transform_3(%arg0: i32, %arg1: i32) -> (i32, i32, i32) {
    %c0_i32 = arith.constant 0 : i32
    %c0_i32_0 = arith.constant 0 : i32
    %c0_i32_1 = arith.constant 0 : i32
    return %arg0, %c0_i32, %c0_i32_0 : i32, i32, i32
  }
  func.func @transform_4(%arg0: i32, %arg1: i32) -> (i32, i32, i32) {
    %c0_i32 = arith.constant 0 : i32
    %c0_i32_0 = arith.constant 0 : i32
    %c0_i32_1 = arith.constant 0 : i32
    return %arg0, %c0_i32, %c0_i32_0 : i32, i32, i32
  }
}

</mosaic_0001>

<llo_original>
// kernel: tpu_custom_call.1
$region0: #{tpu_custom_call.1}
  #allocation0 [shape = 'u32[]', space=smem, size = 0x4, offset = 0x4, fixed_abs, tag = 'smem constant byte address 0x4 - core index']
  #allocation1 [shape = 'u32[144,128]{1,0:T(1,128)}', space=vmem, size = 0x12000, scoped, tag = 'internal scratch']
  %s0 = inlined_call_operand.vmem [shape: f32[128,8], index: 0, kind: input, shape index: {}]
  %s1 = inlined_call_operand.vmem [shape: f32[128,32], index: 1, kind: input, shape index: {}]
  %s2 = inlined_call_operand.hbm [shape: f32[1,8,32], index: 2, kind: output, shape index: {0}]
  %s3 = inlined_call_operand.hbm [shape: f32[1,1,8], index: 3, kind: output, shape index: {1}]
  %s4 = inlined_call_operand.hbm [shape: f32[1,1,1], index: 4, kind: output, shape index: {2}]
  %5 = xla_tuple %s2, %s3, %s4
  %s6 = sld [smem:[#allocation0]]
  $region38: #{tpu_custom_call.1} parent=0
    _
  %s8 = ssub.s32 1, %s6
  %s9 = scalar_select 0, %s8, %s6
  $region1: #{tpu_custom_call.1} parent=0
    #allocation2 [shape = 'u8[4096]{0}', space=vmem, size = 0x1000, scoped, tag = 'output window, operand 0, single buffered']
    #allocation3 [shape = 's32[1]{0}', space=sflag, size = 0x4, scoped, tag = 'scoped memory for tpu_custom_call.1']
    #allocation4 [shape = 'u8[512]{0}', space=vmem, size = 0x400, scoped, tag = 'output window, operand 1, single buffered']
    #allocation5 [shape = 's32[1]{0}', space=sflag, size = 0x4, scoped, tag = 'scoped memory for tpu_custom_call.1']
    #allocation6 [shape = 'u8[512]{0}', space=vmem, size = 0x400, scoped, tag = 'output window, operand 2, single buffered']
    %10 = vsyncpa [#allocation3], 0
    %11 = vsyncpa [#allocation5], 0
    // Predicated region
    $region2: #{tpu_custom_call.1} parent=1 // pred_check
      _
    $region3: #{tpu_custom_call.1} parent=1 // pred_check_branch
      %13 = sbr.rel (0) target = $region5
    $region4: #{tpu_custom_call.1} parent=1 // pred_region
      %s14 = sadd.s32 0, 0
      %p15 = scmp.lt.s32.totalorder %s14, 0
      %s16 = scalar_select %p15, %s14, 0
      %s17 = smul.u32 16, %s16
      %p18 = scmp.lt.s32.totalorder %s17, 15
      %s19 = scalar_select %p18, %s17, 15
      %s20 = smul.addr %s19, 8
      %s21 = scalar_lea.vmem %s0, %s20
      %s22 = sadd.s32 0, 0
      %p23 = scmp.lt.s32.totalorder %s22, 0
      %s24 = scalar_select %p23, %s22, 0
      %s25 = smul.u32 16, %s24
    $region5: #{tpu_custom_call.1} parent=1 // pred_fallthru
      _
    // Predicated region
    $region6: #{tpu_custom_call.1} parent=1 // pred_check
      _
    $region7: #{tpu_custom_call.1} parent=1 // pred_check_branch
      %27 = sbr.rel (0) target = $region9
    $region8: #{tpu_custom_call.1} parent=1 // pred_region
      %s28 = sadd.s32 0, 0
      %p29 = scmp.lt.s32.totalorder %s28, 0
      %s30 = scalar_select %p29, %s28, 0
      %s31 = smul.u32 16, %s30
      %p32 = scmp.lt.s32.totalorder %s31, 15
      %s33 = scalar_select %p32, %s31, 15
      %s34 = smul.addr %s33, 8
      %s35 = scalar_lea.vmem %s1, %s34
      %s36 = sadd.s32 0, 0
      %p37 = scmp.lt.s32.totalorder %s36, 0
      %s38 = scalar_select %p37, %s36, 0
      %s39 = smul.u32 16, %s38
    $region9: #{tpu_custom_call.1} parent=1 // pred_fallthru
      _
    %s40 = sadd.s32 0, 0
    %p41 = scmp.lt.s32.totalorder %s40, 0
    %s42 = scalar_select %p41, %s40, 0
    %s43 = smul.u32 16, %s42
    %p44 = scmp.lt.s32.totalorder %s43, 15
    %s45 = scalar_select %p44, %s43, 15
    %s46 = smul.addr %s45, 8
    %s47 = scalar_lea.vmem %s0, %s46
    %s48 = sadd.s32 0, 0
    %p49 = scmp.lt.s32.totalorder %s48, 0
    %s50 = scalar_select %p49, %s48, 0
    %s51 = smul.u32 16, %s50
    %p52 = scmp.lt.s32.totalorder %s51, 15
    %s53 = scalar_select %p52, %s51, 15
    %s54 = smul.addr %s53, 8
    %s55 = scalar_lea.vmem %s1, %s54
    %s56 = sadd.s32 0, 0
    %p57 = scmp.lt.s32.totalorder %s56, 0
    %s58 = scalar_select %p57, %s56, 0
    %s59 = smul.u32 16, %s58
    %p60 = scmp.lt.s32.totalorder %s59, 15
    %s61 = scalar_select %p60, %s59, 15
    %s62 = smul.addr %s61, 8
    %s63 = scalar_lea.vmem %s0, %s62
    %s64 = sadd.s32 0, 0
    %p65 = scmp.lt.s32.totalorder %s64, 0
    %s66 = scalar_select %p65, %s64, 0
    %s67 = smul.u32 16, %s66
    %s68 = sadd.s32 0, 0
    %p69 = scmp.lt.s32.totalorder %s68, 0
    %s70 = scalar_select %p69, %s68, 0
    %s71 = smul.u32 16, %s70
    %p72 = scmp.lt.s32.totalorder %s71, 15
    %s73 = scalar_select %p72, %s71, 15
    %s74 = smul.addr %s73, 8
    %s75 = scalar_lea.vmem %s1, %s74
    %s76 = sadd.s32 0, 0
    %p77 = scmp.lt.s32.totalorder %s76, 0
    %s78 = scalar_select %p77, %s76, 0
    %s79 = smul.u32 16, %s78
    %p80 = scmp.eq.s32.totalorder 0, 0
    // Predicated region
    $region10: #{tpu_custom_call.1} parent=1 // pred_check
      %p81 = pneg %p80
    $region11: #{tpu_custom_call.1} parent=1 // pred_check_branch
      %83 = sbr.rel (%p81) target = $region13
    $region12: #{tpu_custom_call.1} parent=1 // pred_region
      %vm84 = vcmask 261120
      %85 = vst.msk [vmem:[#allocation2] sm:$0xff] %vm84, 0.0
      %vm86 = vcmask 57344
      %87 = vst.msk [vmem:[#allocation4] sm:$0x1] %vm86, 0.0
      %vm88 = vcmask 0
      %89 = vst.msk [vmem:[#allocation6] sm:$0x1] %vm88, 0.0
    $region13: #{tpu_custom_call.1} parent=1 // pred_fallthru
      _
    %v90 = vld [vmem:[%s63] sm:$0xff]
    %v91 = vld [vmem:[%s63 + $0x8] sm:$0xff]
    %v92 = vld [vmem:[%s63 + $0x10] sm:$0xff]
    %v93 = vld [vmem:[%s63 + $0x18] sm:$0xff]
    %v94 = vld [vmem:[%s63 + $0x20] sm:$0xff]
    %v95 = vld [vmem:[%s63 + $0x28] sm:$0xff]
    %v96 = vld [vmem:[%s63 + $0x30] sm:$0xff]
    %v97 = vld [vmem:[%s63 + $0x38] sm:$0xff]
    %v98 = vld [vmem:[%s63 + $0x40] sm:$0xff]
    %v99 = vld [vmem:[%s63 + $0x48] sm:$0xff]
    %v100 = vld [vmem:[%s63 + $0x50] sm:$0xff]
    %v101 = vld [vmem:[%s63 + $0x58] sm:$0xff]
    %v102 = vld [vmem:[%s63 + $0x60] sm:$0xff]
    %v103 = vld [vmem:[%s63 + $0x68] sm:$0xff]
    %v104 = vld [vmem:[%s63 + $0x70] sm:$0xff]
    %v105 = vld [vmem:[%s63 + $0x78] sm:$0xff]
    %v106 = vld [vmem:[%s75] sm:$0xff]
    %v107 = vld [vmem:[%s75 + $0x8] sm:$0xff]
    %v108 = vld [vmem:[%s75 + $0x10] sm:$0xff]
    %v109 = vld [vmem:[%s75 + $0x18] sm:$0xff]
    %v110 = vld [vmem:[%s75 + $0x20] sm:$0xff]
    %v111 = vld [vmem:[%s75 + $0x28] sm:$0xff]
    %v112 = vld [vmem:[%s75 + $0x30] sm:$0xff]
    %v113 = vld [vmem:[%s75 + $0x38] sm:$0xff]
    %v114 = vld [vmem:[%s75 + $0x40] sm:$0xff]
    %v115 = vld [vmem:[%s75 + $0x48] sm:$0xff]
    %v116 = vld [vmem:[%s75 + $0x50] sm:$0xff]
    %v117 = vld [vmem:[%s75 + $0x58] sm:$0xff]
    %v118 = vld [vmem:[%s75 + $0x60] sm:$0xff]
    %v119 = vld [vmem:[%s75 + $0x68] sm:$0xff]
    %v120 = vld [vmem:[%s75 + $0x70] sm:$0xff]
    %v121 = vld [vmem:[%s75 + $0x78] sm:$0xff]
    %v122 = vld [vmem:[#allocation2] sm:$0xff]
    %123 = vxpose.xlu0.b32.start [1/16] %v90, 128
    %124 = vxpose.xlu0.b32.cont [2/16] %v91, 128
    %125 = vxpose.xlu0.b32.cont [3/16] %v92, 128
    %126 = vxpose.xlu0.b32.cont [4/16] %v93, 128
    %127 = vxpose.xlu0.b32.cont [5/16] %v94, 128
    %128 = vxpose.xlu0.b32.cont [6/16] %v95, 128
    %129 = vxpose.xlu0.b32.cont [7/16] %v96, 128
    %130 = vxpose.xlu0.b32.cont [8/16] %v97, 128
    %131 = vxpose.xlu0.b32.cont [9/16] %v98, 128
    %132 = vxpose.xlu0.b32.cont [10/16] %v99, 128
    %133 = vxpose.xlu0.b32.cont [11/16] %v100, 128
    %134 = vxpose.xlu0.b32.cont [12/16] %v101, 128
    %135 = vxpose.xlu0.b32.cont [13/16] %v102, 128
    %136 = vxpose.xlu0.b32.cont [14/16] %v103, 128
    %137 = vxpose.xlu0.b32.cont [15/16] %v104, 128
    %138 = vxpose.xlu0.b32.end [16/16] %v105, 128
    %v139 = vpop.trf.xlu0
    %v140 = vpop.trf.xlu0
    %v141 = vpop.trf.xlu0
    %v142 = vpop.trf.xlu0
    %v143 = vpop.trf.xlu0
    %v144 = vpop.trf.xlu0
    %v145 = vpop.trf.xlu0
    %v146 = vpop.trf.xlu0
    %v147 = vpop.trf.xlu0
    %v148 = vpop.trf.xlu0
    %v149 = vpop.trf.xlu0
    %v150 = vpop.trf.xlu0
    %v151 = vpop.trf.xlu0
    %v152 = vpop.trf.xlu0
    %v153 = vpop.trf.xlu0
    %v154 = vpop.trf.xlu0
    %155 = vmatprep.subr.mxu0 0.0
    %156 = vmatpush1.msra.mxu0 %v106
    %157 = vmatprep.subr.mxu0 0.0
    %158 = vmatpush1.msra.mxu0 %v107
    %159 = vmatprep.subr.mxu0 0.0
    %160 = vmatpush1.msra.mxu0 %v108
    %161 = vmatprep.subr.mxu0 0.0
    %162 = vmatpush1.msra.mxu0 %v109
    %163 = vmatprep.subr.mxu0 0.0
    %164 = vmatpush1.msra.mxu0 %v110
    %165 = vmatprep.subr.mxu0 0.0
    %166 = vmatpush1.msra.mxu0 %v111
    %167 = vmatprep.subr.mxu0 0.0
    %168 = vmatpush1.msra.mxu0 %v112
    %169 = vmatprep.subr.mxu0 0.0
    %170 = vmatpush1.msra.mxu0 %v113
    %171 = vmatprep.subr.mxu0 0.0
    %172 = vmatpush1.msra.mxu0 %v114
    %173 = vmatprep.subr.mxu0 0.0
    %174 = vmatpush1.msra.mxu0 %v115
    %175 = vmatprep.subr.mxu0 0.0
    %176 = vmatpush1.msra.mxu0 %v116
    %177 = vmatprep.subr.mxu0 0.0
    %178 = vmatpush1.msra.mxu0 %v117
    %179 = vmatprep.subr.mxu0 0.0
    %180 = vmatpush1.msra.mxu0 %v118
    %181 = vmatprep.subr.mxu0 0.0
    %182 = vmatpush1.msra.mxu0 %v119
    %183 = vmatprep.subr.mxu0 0.0
    %184 = vmatpush1.msra.mxu0 %v120
    %185 = vmatprep.subr.mxu0 0.0
    %186 = vmatpush1.msra.mxu0 %v121
    %187 = vmatprep.subr.mxu0 0.0
    %188 = vmatpush1.msra.mxu0 0.0
    %189 = vmatprep.subr.mxu0 0.0
    %190 = vmatpush1.msra.mxu0 0.0
    %191 = vmatprep.subr.mxu0 0.0
    %192 = vmatpush1.msra.mxu0 0.0
    %193 = vmatprep.subr.mxu0 0.0
    %194 = vmatpush1.msra.mxu0 0.0
    %195 = vmatprep.subr.mxu0 0.0
    %196 = vmatpush1.msra.mxu0 0.0
    %197 = vmatprep.subr.mxu0 0.0
    %198 = vmatpush1.msra.mxu0 0.0
    %199 = vmatprep.subr.mxu0 0.0
    %200 = vmatpush1.msra.mxu0 0.0
    %201 = vmatprep.subr.mxu0 0.0
    %202 = vmatpush1.msra.mxu0 0.0
    %203 = vmatprep.subr.mxu0 0.0
    %204 = vmatpush1.msra.mxu0 0.0
    %205 = vmatprep.subr.mxu0 0.0
    %206 = vmatpush1.msra.mxu0 0.0
    %207 = vmatprep.subr.mxu0 0.0
    %208 = vmatpush1.msra.mxu0 0.0
    %209 = vmatprep.subr.mxu0 0.0
    %210 = vmatpush1.msra.mxu0 0.0
    %211 = vmatprep.subr.mxu0 0.0
    %212 = vmatpush1.msra.mxu0 0.0
    %213 = vmatprep.subr.mxu0 0.0
    %214 = vmatpush1.msra.mxu0 0.0
    %215 = vmatprep.subr.mxu0 0.0
    %216 = vmatpush1.msra.mxu0 0.0
    %217 = vmatprep.subr.mxu0 0.0
    %218 = vmatpush1.msra.mxu0 0.0
    %219 = vmatprep.mubr.f32.mxu0 0.0
    %220 = vmatmul.mubr.f32.gmra.mrb[0].mxu0 %v139
    %v221 = vpop.f32.mrb[0].mxu0
    %v222 = vadd.f32 0.0, %v221
    %v223 = vpop.f32.mrb[0].mxu0
    %224 = vdwg.mxu0
    %v225 = vadd.f32 %v122, %v222
    %vm226 = vcmask 261120
    %227 = vst.msk [vmem:[#allocation2] sm:$0xff] %vm226, %v225
    %v228 = vld [vmem:[#allocation4] sm:$0x1]
    %vm229 = vcmask 64512
    %v230 = vsel %vm229, %v90, 0.0
    %v231 = vsel %vm229, %v91, 0.0
    %v232 = vadd.f32 %v230, %v231
    %v233 = vsel %vm229, %v92, 0.0
    %v234 = vadd.f32 %v232, %v233
    %v235 = vsel %vm229, %v93, 0.0
    %v236 = vadd.f32 %v234, %v235
    %v237 = vsel %vm229, %v94, 0.0
    %v238 = vadd.f32 %v236, %v237
    %v239 = vsel %vm229, %v95, 0.0
    %v240 = vadd.f32 %v238, %v239
    %v241 = vsel %vm229, %v96, 0.0
    %v242 = vadd.f32 %v240, %v241
    %v243 = vsel %vm229, %v97, 0.0
    %v244 = vadd.f32 %v242, %v243
    %v245 = vsel %vm229, %v98, 0.0
    %v246 = vadd.f32 %v244, %v245
    %v247 = vsel %vm229, %v99, 0.0
    %v248 = vadd.f32 %v246, %v247
    %v249 = vsel %vm229, %v100, 0.0
    %v250 = vadd.f32 %v248, %v249
    %v251 = vsel %vm229, %v101, 0.0
    %v252 = vadd.f32 %v250, %v251
    %v253 = vsel %vm229, %v102, 0.0
    %v254 = vadd.f32 %v252, %v253
    %v255 = vsel %vm229, %v103, 0.0
    %v256 = vadd.f32 %v254, %v255
    %v257 = vsel %vm229, %v104, 0.0
    %v258 = vadd.f32 %v256, %v257
    %v259 = vsel %vm229, %v105, 0.0
    %v260 = vadd.f32 %v258, %v259
    %v261 = vrot.slane %v260, 4
    %v262 = vadd.f32 %v260, %v261
    %v263 = vrot.slane %v262, 2
    %v264 = vadd.f32 %v262, %v263
    %v265 = vrot.slane %v264, 1
    %v266 = vadd.f32 %v264, %v265
    %v267 = vadd.f32 %v228, %v266
    %vm268 = vcmask 57344
    %269 = vst.msk [vmem:[#allocation4] sm:$0x1] %vm268, %v267
    %270 = vadd.xlane.f32.xlu0 %v230
    %v271 = vpop.xlane.xlu0 %270
    %272 = vadd.xlane.f32.xlu0 %v231
    %v273 = vpop.xlane.xlu0 %272
    %274 = vadd.xlane.f32.xlu0 %v233
    %v275 = vpop.xlane.xlu0 %274
    %276 = vadd.xlane.f32.xlu0 %v235
    %v277 = vpop.xlane.xlu0 %276
    %278 = vadd.xlane.f32.xlu0 %v237
    %v279 = vpop.xlane.xlu0 %278
    %280 = vadd.xlane.f32.xlu0 %v239
    %v281 = vpop.xlane.xlu0 %280
    %282 = vadd.xlane.f32.xlu0 %v241
    %v283 = vpop.xlane.xlu0 %282
    %284 = vadd.xlane.f32.xlu0 %v243
    %v285 = vpop.xlane.xlu0 %284
    %286 = vadd.xlane.f32.xlu0 %v245
    %v287 = vpop.xlane.xlu0 %286
    %288 = vadd.xlane.f32.xlu0 %v247
    %v289 = vpop.xlane.xlu0 %288
    %290 = vadd.xlane.f32.xlu0 %v249
    %v291 = vpop.xlane.xlu0 %290
    %292 = vadd.xlane.f32.xlu0 %v251
    %v293 = vpop.xlane.xlu0 %292
    %294 = vadd.xlane.f32.xlu0 %v253
    %v295 = vpop.xlane.xlu0 %294
    %296 = vadd.xlane.f32.xlu0 %v255
    %v297 = vpop.xlane.xlu0 %296
    %298 = vadd.xlane.f32.xlu0 %v257
    %v299 = vpop.xlane.xlu0 %298
    %300 = vadd.xlane.f32.xlu0 %v259
    %v301 = vpop.xlane.xlu0 %300
    %v302 = vmul.f32 %v106, %v106
    %v303 = vmul.f32 %v107, %v107
    %v304 = vmul.f32 %v108, %v108
    %v305 = vmul.f32 %v109, %v109
    %v306 = vmul.f32 %v110, %v110
    %v307 = vmul.f32 %v111, %v111
    %v308 = vmul.f32 %v112, %v112
    %v309 = vmul.f32 %v113, %v113
    %v310 = vmul.f32 %v114, %v114
    %v311 = vmul.f32 %v115, %v115
    %v312 = vmul.f32 %v116, %v116
    %v313 = vmul.f32 %v117, %v117
    %v314 = vmul.f32 %v118, %v118
    %v315 = vmul.f32 %v119, %v119
    %v316 = vmul.f32 %v120, %v120
    %v317 = vmul.f32 %v121, %v121
    %v318 = vsel %vm226, %v302, 0.0
    %319 = vadd.xlane.f32.xlu0 %v318
    %v320 = vpop.xlane.xlu0 %319
    %v321 = vsel %vm226, %v303, 0.0
    %322 = vadd.xlane.f32.xlu0 %v321
    %v323 = vpop.xlane.xlu0 %322
    %v324 = vsel %vm226, %v304, 0.0
    %325 = vadd.xlane.f32.xlu0 %v324
    %v326 = vpop.xlane.xlu0 %325
    %v327 = vsel %vm226, %v305, 0.0
    %328 = vadd.xlane.f32.xlu0 %v327
    %v329 = vpop.xlane.xlu0 %328
    %v330 = vsel %vm226, %v306, 0.0
    %331 = vadd.xlane.f32.xlu0 %v330
    %v332 = vpop.xlane.xlu0 %331
    %v333 = vsel %vm226, %v307, 0.0
    %334 = vadd.xlane.f32.xlu0 %v333
    %v335 = vpop.xlane.xlu0 %334
    %v336 = vsel %vm226, %v308, 0.0
    %337 = vadd.xlane.f32.xlu0 %v336
    %v338 = vpop.xlane.xlu0 %337
    %v339 = vsel %vm226, %v309, 0.0
    %340 = vadd.xlane.f32.xlu0 %v339
    %v341 = vpop.xlane.xlu0 %340
    %v342 = vsel %vm226, %v310, 0.0
    %343 = vadd.xlane.f32.xlu0 %v342
    %v344 = vpop.xlane.xlu0 %343
    %v345 = vsel %vm226, %v311, 0.0
    %346 = vadd.xlane.f32.xlu0 %v345
    %v347 = vpop.xlane.xlu0 %346
    %v348 = vsel %vm226, %v312, 0.0
    %349 = vadd.xlane.f32.xlu0 %v348
    %v350 = vpop.xlane.xlu0 %349
    %v351 = vsel %vm226, %v313, 0.0
    %352 = vadd.xlane.f32.xlu0 %v351
    %v353 = vpop.xlane.xlu0 %352
    %v354 = vsel %vm226, %v314, 0.0
    %355 = vadd.xlane.f32.xlu0 %v354
    %v356 = vpop.xlane.xlu0 %355
    %v357 = vsel %vm226, %v315, 0.0
    %358 = vadd.xlane.f32.xlu0 %v357
    %v359 = vpop.xlane.xlu0 %358
    %v360 = vsel %vm226, %v316, 0.0
    %361 = vadd.xlane.f32.xlu0 %v360
    %v362 = vpop.xlane.xlu0 %361
    %v363 = vsel %vm226, %v317, 0.0
    %364 = vadd.xlane.f32.xlu0 %v363
    %v365 = vpop.xlane.xlu0 %364
    %v366 = vld [vmem:[#allocation6] sm:$0x1]
    %v367 = vmul.f32 %v271, %v320
    %v368 = vmul.f32 %v273, %v323
    %v369 = vmul.f32 %v275, %v326
    %v370 = vmul.f32 %v277, %v329
    %v371 = vmul.f32 %v279, %v332
    %v372 = vmul.f32 %v281, %v335
    %v373 = vmul.f32 %v283, %v338
    %v374 = vmul.f32 %v285, %v341
    %v375 = vmul.f32 %v287, %v344
    %v376 = vmul.f32 %v289, %v347
    %v377 = vmul.f32 %v291, %v350
    %v378 = vmul.f32 %v293, %v353
    %v379 = vmul.f32 %v295, %v356
    %v380 = vmul.f32 %v297, %v359
    %v381 = vmul.f32 %v299, %v362
    %v382 = vmul.f32 %v301, %v365
    %vm383 = vcmask 7168
    %v384 = vsel %vm383, %v367, 0.0
    %v385 = vsel %vm383, %v368, 0.0
    %v386 = vadd.f32 %v384, %v385
    %v387 = vsel %vm383, %v369, 0.0
    %v388 = vadd.f32 %v386, %v387
    %v389 = vsel %vm383, %v370, 0.0
    %v390 = vadd.f32 %v388, %v389
    %v391 = vsel %vm383, %v371, 0.0
    %v392 = vadd.f32 %v390, %v391
    %v393 = vsel %vm383, %v372, 0.0
    %v394 = vadd.f32 %v392, %v393
    %v395 = vsel %vm383, %v373, 0.0
    %v396 = vadd.f32 %v394, %v395
    %v397 = vsel %vm383, %v374, 0.0
    %v398 = vadd.f32 %v396, %v397
    %v399 = vsel %vm383, %v375, 0.0
    %v400 = vadd.f32 %v398, %v399
    %v401 = vsel %vm383, %v376, 0.0
    %v402 = vadd.f32 %v400, %v401
    %v403 = vsel %vm383, %v377, 0.0
    %v404 = vadd.f32 %v402, %v403
    %v405 = vsel %vm383, %v378, 0.0
    %v406 = vadd.f32 %v404, %v405
    %v407 = vsel %vm383, %v379, 0.0
    %v408 = vadd.f32 %v406, %v407
    %v409 = vsel %vm383, %v380, 0.0
    %v410 = vadd.f32 %v408, %v409
    %v411 = vsel %vm383, %v381, 0.0
    %v412 = vadd.f32 %v410, %v411
    %v413 = vsel %vm383, %v382, 0.0
    %v414 = vadd.f32 %v412, %v413
    %415 = vadd.xlane.f32.xlu0 %v414
    %v416 = vpop.xlane.xlu0 %415
    %v417 = vrot.slane %v416, 4
    %v418 = vadd.f32 %v416, %v417
    %v419 = vrot.slane %v418, 2
    %v420 = vadd.f32 %v418, %v419
    %v421 = vrot.slane %v420, 1
    %v422 = vadd.f32 %v420, %v421
    %s423 = vtos %v422
    %v424 = vstv %s423
    %v425 = vadd.f32 %v366, %v424
    %vm426 = vcmask 0
    %427 = vst.msk [vmem:[#allocation6] sm:$0x1] %vm426, %v425
    // Predicated region
    $region14: #{tpu_custom_call.1} parent=1 // pred_check
      _
    $region15: #{tpu_custom_call.1} parent=1 // pred_check_branch
      %429 = sbr.rel (0) target = $region17
    $region16: #{tpu_custom_call.1} parent=1 // pred_region
      %s431 = ssub.s32 128, 128
      %432 = vsyncadd [#allocation3], %s431
      %s434 = sshll.u32 [#allocation2], 4
      %s435 = int_to_ptr.vmem [resolvable:$true] %s434
      %437 = dma.vmem_to_hbm [thread:$0]  %s435, 128, %s2, [#allocation3]
    $region17: #{tpu_custom_call.1} parent=1 // pred_fallthru
      _
    // Predicated region
    $region18: #{tpu_custom_call.1} parent=1 // pred_check
      _
    $region19: #{tpu_custom_call.1} parent=1 // pred_check_branch
      %439 = sbr.rel (0) target = $region21
    $region20: #{tpu_custom_call.1} parent=1 // pred_region
      %s441 = ssub.s32 16, 16
      %442 = vsyncadd [#allocation5], %s441
      %s444 = sshll.u32 [#allocation4], 4
      %s445 = int_to_ptr.vmem [resolvable:$true] %s444
      %447 = dma.vmem_to_hbm [thread:$0]  %s445, 16, %s3, [#allocation5]
    $region21: #{tpu_custom_call.1} parent=1 // pred_fallthru
      _
    // Predicated region
    $region22: #{tpu_custom_call.1} parent=1 // pred_check
      _
    $region23: #{tpu_custom_call.1} parent=1 // pred_check_branch
      %449 = sbr.rel (0) target = $region25
    $region24: #{tpu_custom_call.1} parent=1 // pred_region
      %s451 = ssub.s32 16, 16
      %452 = vsyncadd [#allocation5], %s451
      %s454 = sshll.u32 [#allocation6], 4
      %s455 = int_to_ptr.vmem [resolvable:$true] %s454
      %457 = dma.vmem_to_hbm [thread:$0]  %s455, 16, %s4, [#allocation5]
    $region25: #{tpu_custom_call.1} parent=1 // pred_fallthru
      _
    // Predicated region
    $region26: #{tpu_custom_call.1} parent=1 // pred_check
      _
    $region27: #{tpu_custom_call.1} parent=1 // pred_check_branch
      %459 = sbr.rel (0) target = $region29
    $region28: #{tpu_custom_call.1} parent=1 // pred_region
      %460 = dma.done [#allocation3], 128
    $region29: #{tpu_custom_call.1} parent=1 // pred_fallthru
      _
    // Predicated region
    $region30: #{tpu_custom_call.1} parent=1 // pred_check
      _
    $region31: #{tpu_custom_call.1} parent=1 // pred_check_branch
      %462 = sbr.rel (0) target = $region33
    $region32: #{tpu_custom_call.1} parent=1 // pred_region
      %463 = dma.done [#allocation5], 16
    $region33: #{tpu_custom_call.1} parent=1 // pred_fallthru
      _
    // Predicated region
    $region34: #{tpu_custom_call.1} parent=1 // pred_check
      _
    $region35: #{tpu_custom_call.1} parent=1 // pred_check_branch
      %465 = sbr.rel (0) target = $region37
    $region36: #{tpu_custom_call.1} parent=1 // pred_region
      %466 = dma.done [#allocation5], 16
    $region37: #{tpu_custom_call.1} parent=1 // pred_fallthru
      _
    %467 = vsyncpa [#allocation3], 1
    %468 = vsyncpa [#allocation5], 1

</llo_original>
